<compile_context>
chip_gen: v7x
topology: tpu7x:2x2x1
jax: 0.10.0
libtpu: 0.0.40
codegen_flags: <defaults>
</compile_context>

<pallas_src>
import functools
import math

import jax
import jax.numpy as jnp
from jax import lax
from jax.experimental import pallas as pl
from jax.experimental.pallas import tpu as pltpu


# ----------------------------------------------------------------------------
# Weight normalization (lucidrains karras-unet): per-output-filter L2 normalize
# of the flattened fan (F.normalize(dim=-1, eps)), rescaled by sqrt(fan).
# ----------------------------------------------------------------------------
def normalize_weight(weight, eps=1e-4):
    cout = weight.shape[0]
    flat = weight.reshape(cout, -1).astype(jnp.float32)
    norm = jnp.sqrt(jnp.sum(flat * flat, axis=-1, keepdims=True))
    flat = flat / jnp.maximum(norm, eps)           # == F.normalize(dim=-1, eps=eps)
    flat = flat * math.sqrt(flat.size / cout)      # * sqrt(numel / dim_out)
    return flat.reshape(weight.shape).astype(weight.dtype)


def _round_up(x, m):
    return (x + m - 1) // m * m


def _cdiv(a, b):
    return -(-a // b)


# ----------------------------------------------------------------------------
# Kernel.  Per grid step (b, t, j):
#   x_ref : Path A (image-resident): (1, Hp, Wp, Cin)  bf16, re-used across t,j
#           Path B (pre-tiled)     : (1, 1, Hh, Wp, Cin) bf16 row tile w/ halo
#   w_ref : (G, D, TCout) bf16   (G dot-groups, depth D = taps_per_group*Cin)
#   o_ref : (1, TH, Wb, TCout)   lane-dense output tile
#   acc   : (TH*Wb, TCout) f32 VMEM accumulator (only when G > 1)
# ----------------------------------------------------------------------------
def _conv_kernel(x_ref, w_ref, o_ref, *acc_scratch,
                 K, TH, Wb, Cin, tpg, pre_tiled):
    G = (K * K) // tpg
    Hh = TH + K - 1

    # Load the row window ONCE as a bf16 value; all tap slices happen on it.
    if pre_tiled:
        xt = x_ref[0, 0]                                   # (Hh, Wp, Cin)
    else:
        t = pl.program_id(1)
        xt = x_ref[0, pl.ds(t * TH, Hh)]                   # (Hh, Wp, Cin)

    def group_lhs(g):
        # In-register im2col for dot-group g: concat the tap patches along the
        # channel (lane) axis -> (TH, Wb, tpg*Cin) -> (TH*Wb, tpg*Cin).
        pieces = []
        for tap in range(g * tpg, (g + 1) * tpg):
            kh, kw = divmod(tap, K)
            pieces.append(xt[kh:kh + TH, kw:kw + Wb, :])
        lhs = pieces[0] if tpg == 1 else jnp.concatenate(pieces, axis=-1)
        return lhs.reshape(TH * Wb, tpg * Cin)

    if G == 1:
        # Small fan: one deep MXU contraction, write straight to the output.
        out = jnp.dot(group_lhs(0), w_ref[0],
                      preferred_element_type=jnp.float32)
        o_ref[...] = out.reshape(o_ref.shape).astype(o_ref.dtype)
    else:
        # Larger fan: one matmul per kh (kw taps folded into the contraction),
        # accumulated in an f32 VMEM scratch (no vreg-spill traffic).
        acc_ref = acc_scratch[0]
        for g in range(G):
            contrib = jnp.dot(group_lhs(g), w_ref[g],
                              preferred_element_type=jnp.float32)
            if g == 0:
                acc_ref[...] = contrib
            else:
                acc_ref[...] += contrib
        o_ref[...] = acc_ref[...].reshape(o_ref.shape).astype(o_ref.dtype)


# ----------------------------------------------------------------------------
# Forward (jitted): normalization + padding + tiling plan + pallas_call.
# ----------------------------------------------------------------------------
def _mp_conv2d_forward(x, weight, *, eps, fan_in, concat_ones, pad, block_h,
                       vmem_budget_bytes):
    """x: (N, dim_in, H, W) NCHW; weight: (Cout, Cin, K, K) OIHW (Cin incl. ones)."""
    N, _, H, W = x.shape
    Cout, Cin, K, _ = weight.shape
    p = pad
    out_dtype = x.dtype

    Ho = H + 2 * p - (K - 1)                 # output spatial dims (VALID conv
    Wo = W + 2 * p - (K - 1)                 # of the padded input)
    Wb = _round_up(max(Wo, 8), 8)            # sublane-friendly output width
    extra_w = Wb - Wo
    Wp = W + 2 * p + extra_w                 # padded width seen by the kernel

    # Output channel tile: 256 fills the v6e/v7x MXU when there is that much
    # output; 128 otherwise (and is the better choice on v5e's 128x128 MXU).
    TCout = 256 if Cout >= 256 else 128
    Cout_pad = _round_up(Cout, TCout)
    n_cout = Cout_pad // TCout

    # Dot grouping: fold all K*K taps into one contraction when the fan is
    # small; otherwise fold only the kw taps per kh (K matmuls of depth K*Cin).
    # Sweep per chip: the fold threshold can go up to ~1152 on v6e.
    fold = (K * K * Cin) <= 576
    tpg = (K * K) if fold else K             # taps per dot group
    G = (K * K) // tpg
    D = tpg * Cin

    # ---- row-tile plan (all Python ints, trace time) -------------------------
    def vmem_est(TH, whole_image):
        num_t_ = _cdiv(Ho, TH)
        rows = (num_t_ * TH + K - 1) if whole_image else (TH + K - 1)
        xb = rows * _round_up(Wp, 16) * _round_up(Cin, 128) * 2
        ob = TH * Wb * TCout * 4
        wb = G * _round_up(D, 16) * _round_up(TCout, 128) * 2
        acc = TH * Wb * TCout * 4 if G > 1 else 0
        tmp = 2 * TH * Wb * _round_up(D, 128) * 2 + TH * Wb * TCout * 4
        return 2 * (xb + ob + wb) + acc + tmp  # inputs/outputs double-buffered

    TH = max(1, min(block_h, Ho))
    if N == 1 and n_cout == 1 and TH >= Ho and Ho > 8:
        TH = _cdiv(Ho, 2)                    # >=2 grid steps so both v7x TCs work
    whole_image = True
    while vmem_est(TH, True) > vmem_budget_bytes and TH > 8:
        TH = max(8, _cdiv(TH, 2))
    if vmem_est(TH, True) > vmem_budget_bytes:
        whole_image = False                  # image too big to keep resident
        while vmem_est(TH, False) > vmem_budget_bytes and TH > 8:
            TH = max(8, _cdiv(TH, 2))

    num_t = _cdiv(Ho, TH)
    Ho_pad = num_t * TH
    Hp = Ho_pad + K - 1                      # padded rows per image
    Hh = TH + K - 1                          # rows per tile incl. halo

    # ---- weights: normalize in f32, pad Cout, regroup taps, cast to bf16 ----
    w = normalize_weight(weight, eps=eps) / math.sqrt(fan_in)
    w = jnp.transpose(w, (2, 3, 1, 0))                        # (K, K, Cin, Cout)
    w = jnp.pad(w, ((0, 0), (0, 0), (0, 0), (0, Cout_pad - Cout)))
    w_mat = w.reshape(K * K * Cin, Cout_pad).reshape(G, D, Cout_pad)
    w_mat = w_mat.astype(jnp.bfloat16)

    # ---- activations: ONE fused materialization pass -------------------------
    # NCHW->NHWC, ones channel, circular-W pad, zero-H pad (+ bottom fill to a
    # multiple of TH, + right fill so Wo is a multiple of 8), bf16 cast.
    xh = jnp.transpose(x, (0, 2, 3, 1))                       # (N, H, W, dim_in)
    if concat_ones:
        xh = jnp.concatenate(
            [jnp.ones(xh.shape[:-1] + (1,), xh.dtype), xh], axis=-1)
    if p > 0:
        xh = jnp.pad(xh, ((0, 0), (0, 0), (p, p), (0, 0)), mode='wrap')
    xh = jnp.pad(xh, ((0, 0), (p, p + Ho_pad - Ho), (0, extra_w), (0, 0)))
    xh = xh.astype(jnp.bfloat16)                              # (N, Hp, Wp, Cin)

    if whole_image:
        # Path A: whole padded image resident in VMEM; block index constant
        # along (t, j) so it is DMA'd exactly once per image (no halo dup).
        x_in = xh
        x_spec = pl.BlockSpec((1, Hp, Wp, Cin), lambda b, t, j: (b, 0, 0, 0))
    else:
        # Path B (fallback for huge images): halo-duplicated row tiles in HBM
        # (one extra HBM pass, but bounded VMEM per step).
        row_idx = (jnp.arange(num_t) * TH)[:, None] + jnp.arange(Hh)[None, :]
        x_in = xh[:, row_idx]                                 # (N, num_t, Hh, Wp, Cin)
        x_spec = pl.BlockSpec((1, 1, Hh, Wp, Cin),
                              lambda b, t, j: (b, t, 0, 0, 0))

    kernel = functools.partial(_conv_kernel, K=K, TH=TH, Wb=Wb, Cin=Cin,
                               tpg=tpg, pre_tiled=not whole_image)
    scratch = [] if G == 1 else [pltpu.VMEM((TH * Wb, TCout), jnp.float32)]

    out = pl.pallas_call(
        kernel,
        out_shape=jax.ShapeDtypeStruct((N, Ho_pad, Wb, Cout_pad), out_dtype),
        grid_spec=pltpu.PrefetchScalarGridSpec(
            num_scalar_prefetch=0,
            grid=(N, num_t, n_cout),
            in_specs=[
                x_spec,
                # NOTE: weights are grid-constant along (b, t); if supported,
                # pipeline_mode=pl.Buffered(1) here would skip double-buffering
                # them (small VMEM win).
                pl.BlockSpec((G, D, TCout), lambda b, t, j: (0, 0, j)),
            ],
            out_specs=pl.BlockSpec((1, TH, Wb, TCout),
                                   lambda b, t, j: (b, t, 0, j)),
            scratch_shapes=scratch,
        ),
        compiler_params=pltpu.CompilerParams(
            dimension_semantics=("parallel", "parallel", "parallel"),
            vmem_limit_bytes=48 * 1024 * 1024,
        ),
    )(x_in, w_mat)

    out = out[:, :Ho, :Wo, :Cout]
    return jnp.transpose(out, (0, 3, 1, 2)).astype(out_dtype)   # back to NCHW


# ----------------------------------------------------------------------------
# Module wrapper (eval-mode forward semantics of the PyTorch Conv2d).
# ----------------------------------------------------------------------------
class Conv2d:
    def __init__(self, dim_in, dim_out, kernel_size, eps=1e-4,
                 concat_ones_to_input=False, *, key, block_h=64,
                 vmem_budget_bytes=36 * 1024 * 1024):
        self.weight = jax.random.normal(
            key,
            (dim_out, dim_in + int(concat_ones_to_input), kernel_size, kernel_size),
            dtype=jnp.float32)
        self.eps = eps
        self.fan_in = dim_in * kernel_size ** 2
        self.concat_ones_to_input = concat_ones_to_input
        self.pad_width = (kernel_size - 1) // 2
        # TODO(synk): training-mode in-place renormalization (self.weight.copy_)
        # is a stateful parameter update with no functional Pallas equivalent;
        # this implements the eval-mode forward only.
        self._fwd = jax.jit(functools.partial(
            _mp_conv2d_forward, eps=eps, fan_in=self.fan_in,
            concat_ones=concat_ones_to_input, pad=self.pad_width,
            block_h=block_h, vmem_budget_bytes=vmem_budget_bytes))

    def __call__(self, x):
        return self._fwd(x, self.weight)


# ----------------------------------------------------------------------------
# Pure-JAX reference (same padding semantics, same bf16 operand quantization).
# ----------------------------------------------------------------------------
def _reference(x, weight, eps, fan_in, concat_ones, p):
    w = normalize_weight(weight, eps=eps) / math.sqrt(fan_in)
    if concat_ones:
        N, _, H, W = x.shape
        x = jnp.concatenate([jnp.ones((N, 1, H, W), x.dtype), x], axis=1)
    if p > 0:
        x = jnp.pad(x, ((0, 0), (0, 0), (0, 0), (p, p)), mode='wrap')
        x = jnp.pad(x, ((0, 0), (0, 0), (p, p), (0, 0)))
    xq = x.astype(jnp.bfloat16).astype(jnp.float32)
    wq = w.astype(jnp.bfloat16).astype(jnp.float32)
    return lax.conv_general_dilated(
        xq, wq, window_strides=(1, 1), padding='VALID',
        dimension_numbers=('NCHW', 'OIHW', 'NCHW'),
        precision=lax.Precision.HIGHEST)


if __name__ == "__main__":
    key = jax.random.PRNGKey(0)
    k_w1, k_x1, k_w2, k_x2, k_w3, k_x3 = jax.random.split(key, 6)

    # --- case 1: small Cin -> single deep contraction (fold), image-resident --
    conv1 = Conv2d(4, 8, 3, concat_ones_to_input=True, key=k_w1)
    x1 = jax.random.normal(k_x1, (2, 4, 16, 16), dtype=jnp.float32)
    out1 = jax.block_until_ready(conv1(x1))
    assert out1.shape == (2, 8, 16, 16), out1.shape
    ref1 = _reference(x1, conv1.weight, conv1.eps, conv1.fan_in, True,
                      conv1.pad_width)
    err1 = float(jnp.max(jnp.abs(out1 - ref1)))
    assert err1 < 1e-2, f"fold-path max abs err {err1}"

    # --- case 2: wider Cin -> per-kh folded taps (G=K), forced 2 row tiles ----
    conv2 = Conv2d(96, 32, 3, concat_ones_to_input=False, key=k_w2)
    x2 = jax.random.normal(k_x2, (1, 96, 16, 16), dtype=jnp.float32)
    out2 = jax.block_until_ready(conv2(x2))
    assert out2.shape == (1, 32, 16, 16), out2.shape
    ref2 = _reference(x2, conv2.weight, conv2.eps, conv2.fan_in, False,
                      conv2.pad_width)
    err2 = float(jnp.max(jnp.abs(out2 - ref2)))
    assert err2 < 1e-2, f"tap-path max abs err {err2}"

    # --- case 3: tiny VMEM budget -> exercises the pre-tiled fallback path ----
    conv3 = Conv2d(16, 16, 3, concat_ones_to_input=False, key=k_w3,
                   vmem_budget_bytes=200_000)
    x3 = jax.random.normal(k_x3, (1, 16, 16, 16), dtype=jnp.float32)
    out3 = jax.block_until_ready(conv3(x3))
    assert out3.shape == (1, 16, 16, 16), out3.shape
    ref3 = _reference(x3, conv3.weight, conv3.eps, conv3.fan_in, False,
                      conv3.pad_width)
    err3 = float(jnp.max(jnp.abs(out3 - ref3)))
    assert err3 < 1e-2, f"fallback-path max abs err {err3}"

    print("KERNEL_OK")
</pallas_src>

<mosaic_0001>
module attributes {stable_mosaic.version = 11 : i64} {
  func.func @_conv_kernel(%arg0: i32, %arg1: i32, %arg2: i32, %arg3: memref<1x18x18x5xbf16, #tpu.memory_space<vmem>>, %arg4: memref<1x45x128xbf16, #tpu.memory_space<vmem>>, %arg5: memref<1x16x16x128xf32, #tpu.memory_space<vmem>>) attributes {dimension_semantics = [#tpu.dimension_semantics<parallel>, #tpu.dimension_semantics<parallel>, #tpu.dimension_semantics<parallel>], iteration_bounds = array<i64: 2, 1, 1>, scalar_prefetch = 0 : i64, scratch_operands = 0 : i64, tpu.core_type = #tpu.core_type<tc>, window_params = [{transform_indices = @transform_0, window_bounds = array<i64: 1, 18, 18, 5>}, {transform_indices = @transform_1, window_bounds = array<i64: 1, 45, 128>}, {transform_indices = @transform_2, window_bounds = array<i64: 1, 16, 16, 128>}]} {
    %c16_i32 = arith.constant 16 : i32
    %0 = arith.muli %arg1, %c16_i32 : i32
    %c0 = arith.constant 0 : index
    %1 = arith.index_cast %0 : i32 to index
    %c0_0 = arith.constant 0 : index
    %c0_1 = arith.constant 0 : index
    %2 = vector.load %arg3[%c0, %1, %c0_0, %c0_1] : memref<1x18x18x5xbf16, #tpu.memory_space<vmem>>, vector<1x18x18x5xbf16>
    %3 = vector.shape_cast %2 : vector<1x18x18x5xbf16> to vector<18x18x5xbf16>
    %4 = vector.extract_strided_slice %3 {offsets = [0, 0, 0], sizes = [16, 16, 5], strides = [1, 1, 1]} : vector<18x18x5xbf16> to vector<16x16x5xbf16>
    %5 = vector.extract_strided_slice %3 {offsets = [0, 1, 0], sizes = [16, 16, 5], strides = [1, 1, 1]} : vector<18x18x5xbf16> to vector<16x16x5xbf16>
    %6 = vector.extract_strided_slice %3 {offsets = [0, 2, 0], sizes = [16, 16, 5], strides = [1, 1, 1]} : vector<18x18x5xbf16> to vector<16x16x5xbf16>
    %7 = vector.extract_strided_slice %3 {offsets = [1, 0, 0], sizes = [16, 16, 5], strides = [1, 1, 1]} : vector<18x18x5xbf16> to vector<16x16x5xbf16>
    %8 = vector.extract_strided_slice %3 {offsets = [1, 1, 0], sizes = [16, 16, 5], strides = [1, 1, 1]} : vector<18x18x5xbf16> to vector<16x16x5xbf16>
    %9 = vector.extract_strided_slice %3 {offsets = [1, 2, 0], sizes = [16, 16, 5], strides = [1, 1, 1]} : vector<18x18x5xbf16> to vector<16x16x5xbf16>
    %10 = vector.extract_strided_slice %3 {offsets = [2, 0, 0], sizes = [16, 16, 5], strides = [1, 1, 1]} : vector<18x18x5xbf16> to vector<16x16x5xbf16>
    %11 = vector.extract_strided_slice %3 {offsets = [2, 1, 0], sizes = [16, 16, 5], strides = [1, 1, 1]} : vector<18x18x5xbf16> to vector<16x16x5xbf16>
    %12 = vector.extract_strided_slice %3 {offsets = [2, 2, 0], sizes = [16, 16, 5], strides = [1, 1, 1]} : vector<18x18x5xbf16> to vector<16x16x5xbf16>
    %13 = tpu.concatenate %4, %5, %6, %7, %8, %9, %10, %11, %12 in 2 : vector<16x16x5xbf16>, vector<16x16x5xbf16>, vector<16x16x5xbf16>, vector<16x16x5xbf16>, vector<16x16x5xbf16>, vector<16x16x5xbf16>, vector<16x16x5xbf16>, vector<16x16x5xbf16>, vector<16x16x5xbf16> -> vector<16x16x45xbf16>
    %14 = vector.shape_cast %13 : vector<16x16x45xbf16> to vector<256x45xbf16>
    %c0_2 = arith.constant 0 : index
    %c0_3 = arith.constant 0 : index
    %c0_4 = arith.constant 0 : index
    %15 = vector.load %arg4[%c0_2, %c0_3, %c0_4] : memref<1x45x128xbf16, #tpu.memory_space<vmem>>, vector<1x45x128xbf16>
    %16 = vector.shape_cast %15 : vector<1x45x128xbf16> to vector<45x128xbf16>
    %cst = arith.constant dense<0.000000e+00> : vector<256x128xf32>
    %17 = tpu.matmul %14, %16, %cst {dimension_numbers = #tpu.dot_dimension_numbers<[1], [0], [0], [1], [0, 0, 1, 1], [], []>} : vector<256x45xbf16>, vector<45x128xbf16>, vector<256x128xf32> -> vector<256x128xf32>
    %18 = vector.shape_cast %17 : vector<256x128xf32> to vector<1x16x16x128xf32>
    %c0_5 = arith.constant 0 : index
    %c0_6 = arith.constant 0 : index
    %c0_7 = arith.constant 0 : index
    %c0_8 = arith.constant 0 : index
    %19 = vector.load %arg5[%c0_5, %c0_6, %c0_7, %c0_8] : memref<1x16x16x128xf32, #tpu.memory_space<vmem>>, vector<1x16x16x128xf32>
    tpu.vector_store %arg5[%c0_5, %c0_6, %c0_7, %c0_8], %18 {strides = array<i32>} : memref<1x16x16x128xf32, #tpu.memory_space<vmem>>, vector<1x16x16x128xf32>,
    return
  }
  func.func @transform_0(%arg0: i32, %arg1: i32, %arg2: i32) -> (i32, i32, i32, i32) {
    %c0_i32 = arith.constant 0 : i32
    %c0_i32_0 = arith.constant 0 : i32
    %c0_i32_1 = arith.constant 0 : i32
    %c0_i32_2 = arith.constant 0 : i32
    return %arg0, %c0_i32, %c0_i32_0, %c0_i32_1 : i32, i32, i32, i32
  }
  func.func @transform_1(%arg0: i32, %arg1: i32, %arg2: i32) -> (i32, i32, i32) {
    %c0_i32 = arith.constant 0 : i32
    %c0_i32_0 = arith.constant 0 : i32
    %c0_i32_1 = arith.constant 0 : i32
    return %c0_i32, %c0_i32_0, %arg2 : i32, i32, i32
  }
  func.func @transform_2(%arg0: i32, %arg1: i32, %arg2: i32) -> (i32, i32, i32, i32) {
    %c0_i32 = arith.constant 0 : i32
    %c0_i32_0 = arith.constant 0 : i32
    return %arg0, %arg1, %c0_i32, %arg2 : i32, i32, i32, i32
  }
}

</mosaic_0001>

<llo_original>
// kernel: _mp_conv2d_forward.1
$region0: #{_mp_conv2d_forward.1}
  #allocation0 [shape = 'u32[]', space=smem, size = 0x4, offset = 0x4, fixed_abs, tag = 'smem constant byte address 0x4 - core index']
  #allocation1 [shape = 'u32[144,128]{1,0:T(1,128)}', space=vmem, size = 0x12000, scoped, tag = 'internal scratch']
  %s0 = inlined_call_operand.vmem [shape: bf16[2,18,18,5], index: 0, kind: input, shape index: {}]
  %s1 = inlined_call_operand.vmem [shape: bf16[1,45,128], index: 1, kind: input, shape index: {}]
  %s2 = inlined_call_operand.vmem [shape: f32[2,16,16,128], index: 2, kind: output, shape index: {}]
  %s3 = sld [smem:[#allocation0]]
  $region41: #{_mp_conv2d_forward.1} parent=0
    _
  %s5 = ssub.s32 1, %s3
  %s6 = scalar_select 0, %s5, %s3
  loop: start=0, step=1, limit=4
  $region2: #{_mp_conv2d_forward.1} parent=0 // loop_pre_header
    _
  $region3: #{_mp_conv2d_forward.1} parent=0 // loop_header
    %s8 = sphi 0, %s12
    %p9 = scmp.ge.s32.totalorder %s8, 4
    %s15 = sphi 0, %s34
    %s16 = sphi 0, %s30
    %s17 = sphi 0, %s26
    %s18 = sphi 0, %s15
    %s19 = sphi 0, %s16
    %s20 = sphi 0, %s17
    %s21 = sphi 0, %s18
    %s22 = sphi 0, %s19
    %s23 = sphi 0, %s20
    %s37 = sphi 0, %s39
    %s40 = sphi 0, %s37
    %s41 = sphi 0, %s40
    %s57 = sphi 0, %s41
    %s63 = sphi 0, %s65
    %s66 = sphi 0, %s63
    %s67 = sphi 0, %s66
    %s83 = sphi 0, %s67
    %s93 = sphi 0, %s95
    %s96 = sphi 0, %s93
    %s97 = sphi 0, %s96
    %s113 = sphi 0, %s97
  $region4: #{_mp_conv2d_forward.1} parent=0 // loop_header_branch
    %11 = sbr.rel (%p9) target = $region8
  $region5: #{_mp_conv2d_forward.1} parent=0 // loop_body
    %s13 = ssub.s32 %s8, 1
    %s14 = ssub.s32 %s8, 2
    %s24 = sadd.s32 1, %s17
    %p25 = scmp.ge.s32.totalorder %s24, 1
    %s26 = scalar_select %p25, 0, %s24
    %s27 = sadd.s32 1, %s16
    %s28 = scalar_select %p25, %s27, %s16
    %p29 = scmp.ge.s32.totalorder %s28, 1
    %s30 = scalar_select %p29, 0, %s28
    %s31 = sadd.s32 1, %s15
    %s32 = scalar_select %p29, %s31, %s15
    %p33 = scmp.ge.s32.totalorder %s32, 2
    %s34 = scalar_select %p33, 0, %s32
    %s35 = ssub.s32 %s15, %s34
    %p36 = scmp.eq.s32.totalorder %s35, 0
    %s38 = sadd.s32 %s37, 1
    %s39 = scalar_select %p36, %s37, %s38
    %p42 = pneg %p36
    %p43 = scmp.eq.s32.totalorder %s8, 1
    %p44 = por %p42, %p43
    %p45 = scmp.ne.s32.totalorder %s37, %s40
    %p46 = scmp.eq.s32.totalorder %s8, 0
    %p47 = por %p45, %p46
    %p48 = scmp.ne.s32.totalorder %s37, %s40
    %p49 = scmp.eq.s32.totalorder %s13, 1
    %p50 = por %p48, %p49
    %p51 = scmp.ne.s32.totalorder %s40, %s41
    %p52 = scmp.eq.s32.totalorder %s13, 0
    %p53 = por %p51, %p52
    %p54 = scmp.ne.s32.totalorder %s40, %s41
    %p55 = scmp.eq.s32.totalorder %s14, 1
    %p56 = por %p54, %p55
    %p58 = scmp.ne.s32.totalorder %s41, %s57
    %p59 = scmp.eq.s32.totalorder %s14, 0
    %p60 = por %p58, %p59
    %s61 = ssub.s32 %s17, %s26
    %p62 = scmp.eq.s32.totalorder %s61, 0
    %s64 = sadd.s32 %s63, 1
    %s65 = scalar_select %p62, %s63, %s64
    %p68 = pneg %p62
    %p69 = scmp.eq.s32.totalorder %s8, 1
    %p70 = por %p68, %p69
    %p71 = scmp.ne.s32.totalorder %s63, %s66
    %p72 = scmp.eq.s32.totalorder %s8, 0
    %p73 = por %p71, %p72
    %p74 = scmp.ne.s32.totalorder %s63, %s66
    %p75 = scmp.eq.s32.totalorder %s13, 1
    %p76 = por %p74, %p75
    %p77 = scmp.ne.s32.totalorder %s66, %s67
    %p78 = scmp.eq.s32.totalorder %s13, 0
    %p79 = por %p77, %p78
    %p80 = scmp.ne.s32.totalorder %s66, %s67
    %p81 = scmp.eq.s32.totalorder %s14, 1
    %p82 = por %p80, %p81
    %p84 = scmp.ne.s32.totalorder %s67, %s83
    %p85 = scmp.eq.s32.totalorder %s14, 0
    %p86 = por %p84, %p85
    %s87 = ssub.s32 %s15, %s34
    %s88 = ssub.s32 %s16, %s30
    %s89 = sor.u32 %s87, %s88
    %s90 = ssub.s32 %s17, %s26
    %s91 = sor.u32 %s89, %s90
    %p92 = scmp.eq.s32.totalorder %s91, 0
    %s94 = sadd.s32 %s93, 1
    %s95 = scalar_select %p92, %s93, %s94
    %p98 = pneg %p92
    %p99 = scmp.eq.s32.totalorder %s8, 1
    %p100 = por %p98, %p99
    %p101 = scmp.ne.s32.totalorder %s93, %s96
    %p102 = scmp.eq.s32.totalorder %s8, 0
    %p103 = por %p101, %p102
    %p104 = scmp.ne.s32.totalorder %s93, %s96
    %p105 = scmp.eq.s32.totalorder %s13, 1
    %p106 = por %p104, %p105
    %p107 = scmp.ne.s32.totalorder %s96, %s97
    %p108 = scmp.eq.s32.totalorder %s13, 0
    %p109 = por %p107, %p108
    %p110 = scmp.ne.s32.totalorder %s96, %s97
    %p111 = scmp.eq.s32.totalorder %s14, 1
    %p112 = por %p110, %p111
    %p114 = scmp.ne.s32.totalorder %s97, %s113
    %p115 = scmp.eq.s32.totalorder %s14, 0
    %p116 = por %p114, %p115
    %p117 = scmp.le.s32.totalorder 1, %s8
    %p118 = scmp.lt.s32.totalorder %s8, 3
    %p119 = pnand %p117, %p118
    %p120 = pneg %p119
    // Predicated region
    $region9: #{_mp_conv2d_forward.1} parent=5 // pred_check
      _
    $region10: #{_mp_conv2d_forward.1} parent=5 // pred_check_branch
      %122 = sbr.rel (%p119) target = $region12
    $region11: #{_mp_conv2d_forward.1} parent=5 // pred_region
      %s123 = ssub.s32 %s8, 1
      // Predicated region
      $region13: #{_mp_conv2d_forward.1} parent=11 // pred_check
        %p124 = pneg %p79
      $region14: #{_mp_conv2d_forward.1} parent=11 // pred_check_branch
        %126 = sbr.rel (%p124) target = $region16
      $region15: #{_mp_conv2d_forward.1} parent=11 // pred_region
        %p127 = scmp.lt.s32.totalorder %s20, 0
        %s128 = scalar_select %p127, %s20, 0
        %s129 = smul.addr %s128, 4
        %s130 = scalar_lea.vmem %s1, %s129
      $region16: #{_mp_conv2d_forward.1} parent=11 // pred_fallthru
        _
    $region12: #{_mp_conv2d_forward.1} parent=5 // pred_fallthru
      _
    %p131 = scmp.lt.s32.totalorder %s8, 2
    // Predicated region
    $region17: #{_mp_conv2d_forward.1} parent=5 // pred_check
      %p132 = pneg %p131
    $region18: #{_mp_conv2d_forward.1} parent=5 // pred_check_branch
      %134 = sbr.rel (%p132) target = $region20
    $region19: #{_mp_conv2d_forward.1} parent=5 // pred_region
      // Predicated region
      $region21: #{_mp_conv2d_forward.1} parent=19 // pred_check
        %p135 = pneg %p47
      $region22: #{_mp_conv2d_forward.1} parent=19 // pred_check_branch
        %137 = sbr.rel (%p135) target = $region24
      $region23: #{_mp_conv2d_forward.1} parent=19 // pred_region
        %p138 = scmp.lt.s32.totalorder %s15, 1
        %s139 = scalar_select %p138, %s15, 1
        %s140 = smul.addr %s139, 54
        %s141 = smul.addr %s140, 4
        %s142 = scalar_lea.vmem %s0, %s141
      $region24: #{_mp_conv2d_forward.1} parent=19 // pred_fallthru
        _
    $region20: #{_mp_conv2d_forward.1} parent=5 // pred_fallthru
      _
    %p143 = scmp.le.s32.totalorder 1, %s8
    %p144 = scmp.lt.s32.totalorder %s8, 3
    %p145 = pnand %p143, %p144
    %p146 = pneg %p145
    // Predicated region
    $region25: #{_mp_conv2d_forward.1} parent=5 // pred_check
      _
    $region26: #{_mp_conv2d_forward.1} parent=5 // pred_check_branch
      %148 = sbr.rel (%p145) target = $region28
    $region27: #{_mp_conv2d_forward.1} parent=5 // pred_region
      %s149 = ssub.s32 %s8, 1
      %p150 = scmp.lt.s32.totalorder %s18, 1
      %s151 = scalar_select %p150, %s18, 1
      %s152 = smul.addr %s151, 54
      %s153 = smul.addr %s152, 4
      %s154 = scalar_lea.vmem %s0, %s153
      %p155 = pneg %p53
      %p156 = pneg %p50
      %p157 = scmp.lt.s32.totalorder %s20, 0
      %s158 = scalar_select %p157, %s20, 0
      %s159 = smul.addr %s158, 4
      %s160 = scalar_lea.vmem %s1, %s159
      %p161 = pneg %p79
      %p162 = pneg %p76
      %p163 = pneg %p109
      %p164 = pneg %p106
      %s165 = smul.u32 16, %s19
      %p166 = scmp.lt.s32.totalorder %s18, 1
      %s167 = scalar_select %p166, %s18, 1
      %p168 = scmp.lt.s32.totalorder %s165, 15
      %s169 = scalar_select %p168, %s165, 15
      %p170 = scmp.lt.s32.totalorder %s20, 0
      %s171 = scalar_select %p170, %s20, 0
      %s172 = smul.addr %s169, 2
      %s173 = sadd.s32 %s171, %s172
      %s174 = smul.addr %s167, 32
      %s175 = sadd.s32 %s173, %s174
      %s176 = smul.addr %s175, 8
      %s177 = scalar_lea.vmem %s2, %s176
      %p178 = scmp.lt.s32.totalorder %s18, 1
      %s179 = scalar_select %p178, %s18, 1
      %s180 = smul.addr %s179, 54
      %s181 = smul.addr %s180, 4
      %s182 = scalar_lea.vmem %s0, %s181
      %p183 = scmp.lt.s32.totalorder %s20, 0
      %s184 = scalar_select %p183, %s20, 0
      %s185 = smul.addr %s184, 4
      %s186 = scalar_lea.vmem %s1, %s185
      %s187 = smul.u32 16, %s19
      %p188 = scmp.lt.s32.totalorder %s18, 1
      %s189 = scalar_select %p188, %s18, 1
      %p190 = scmp.lt.s32.totalorder %s187, 15
      %s191 = scalar_select %p190, %s187, 15
      %p192 = scmp.lt.s32.totalorder %s20, 0
      %s193 = scalar_select %p192, %s20, 0
      %s194 = smul.addr %s191, 2
      %s195 = sadd.s32 %s193, %s194
      %s196 = smul.addr %s189, 32
      %s197 = sadd.s32 %s195, %s196
      %s198 = smul.addr %s197, 8
      %s199 = scalar_lea.vmem %s2, %s198
      %s200 = smul.u32 16, %s19
      %s202 = smul.u32 %s19, 16
      %s203 = smul.u32 %s202, 3
      %s204 = smul.addr %s203, 4
      %s205 = scalar_lea.vmem %s182, %s204
      %v206 = vld [vmem:[%s205] sm:$0xf]
      %v207 = vld [vmem:[%s205 + $0x4] sm:$0xf]
      %v208 = vld [vmem:[%s205 + $0x8] sm:$0x1]
      %v209 = vld [vmem:[%s205 + $0xc] sm:$0xf]
      %v210 = vld [vmem:[%s205 + $0x10] sm:$0xf]
      %v211 = vld [vmem:[%s205 + $0x14] sm:$0x1]
      %v212 = vld [vmem:[%s205 + $0x18] sm:$0xf]
      %v213 = vld [vmem:[%s205 + $0x1c] sm:$0xf]
      %v214 = vld [vmem:[%s205 + $0x20] sm:$0x1]
      %v215 = vld [vmem:[%s205 + $0x24] sm:$0xf]
      %v216 = vld [vmem:[%s205 + $0x28] sm:$0xf]
      %v217 = vld [vmem:[%s205 + $0x2c] sm:$0x1]
      %v218 = vld [vmem:[%s205 + $0x30] sm:$0xf]
      %v219 = vld [vmem:[%s205 + $0x34] sm:$0xf]
      %v220 = vld [vmem:[%s205 + $0x38] sm:$0x1]
      %v221 = vld [vmem:[%s205 + $0x3c] sm:$0xf]
      %v222 = vld [vmem:[%s205 + $0x40] sm:$0xf]
      %v223 = vld [vmem:[%s205 + $0x44] sm:$0x1]
      %v224 = vld [vmem:[%s205 + $0x48] sm:$0xf]
      %v225 = vld [vmem:[%s205 + $0x4c] sm:$0xf]
      %v226 = vld [vmem:[%s205 + $0x50] sm:$0x1]
      %v227 = vld [vmem:[%s205 + $0x54] sm:$0xf]
      %v228 = vld [vmem:[%s205 + $0x58] sm:$0xf]
      %v229 = vld [vmem:[%s205 + $0x5c] sm:$0x1]
      %v230 = vld [vmem:[%s205 + $0x60] sm:$0xf]
      %v231 = vld [vmem:[%s205 + $0x64] sm:$0xf]
      %v232 = vld [vmem:[%s205 + $0x68] sm:$0x1]
      %v233 = vld [vmem:[%s205 + $0x6c] sm:$0xf]
      %v234 = vld [vmem:[%s205 + $0x70] sm:$0xf]
      %v235 = vld [vmem:[%s205 + $0x74] sm:$0x1]
      %v236 = vld [vmem:[%s205 + $0x78] sm:$0xf]
      %v237 = vld [vmem:[%s205 + $0x7c] sm:$0xf]
      %v238 = vld [vmem:[%s205 + $0x80] sm:$0x1]
      %v239 = vld [vmem:[%s205 + $0x84] sm:$0xf]
      %v240 = vld [vmem:[%s205 + $0x88] sm:$0xf]
      %v241 = vld [vmem:[%s205 + $0x8c] sm:$0x1]
      %v242 = vld [vmem:[%s205 + $0x90] sm:$0xf]
      %v243 = vld [vmem:[%s205 + $0x94] sm:$0xf]
      %v244 = vld [vmem:[%s205 + $0x98] sm:$0x1]
      %v245 = vld [vmem:[%s205 + $0x9c] sm:$0xf]
      %v246 = vld [vmem:[%s205 + $0xa0] sm:$0xf]
      %v247 = vld [vmem:[%s205 + $0xa4] sm:$0x1]
      %v248 = vld [vmem:[%s205 + $0xa8] sm:$0xf]
      %v249 = vld [vmem:[%s205 + $0xac] sm:$0xf]
      %v250 = vld [vmem:[%s205 + $0xb0] sm:$0x1]
      %v251 = vld [vmem:[%s205 + $0xb4] sm:$0xf]
      %v252 = vld [vmem:[%s205 + $0xb8] sm:$0xf]
      %v253 = vld [vmem:[%s205 + $0xbc] sm:$0x1]
      %v254 = vld [vmem:[%s205 + $0xc0] sm:$0xf]
      %v255 = vld [vmem:[%s205 + $0xc4] sm:$0xf]
      %v256 = vld [vmem:[%s205 + $0xc8] sm:$0x1]
      %v257 = vld [vmem:[%s205 + $0xcc] sm:$0xf]
      %v258 = vld [vmem:[%s205 + $0xd0] sm:$0xf]
      %v259 = vld [vmem:[%s205 + $0xd4] sm:$0x1]
      %v292 = vunpack.c.l.b16 %v206
      %v293 = vunpack.c.l.b16 %v207
      %v294 = vunpack.c.l.b16 %v209
      %v295 = vunpack.c.l.b16 %v210
      %v296 = vunpack.c.l.b16 %v212
      %v297 = vunpack.c.l.b16 %v213
      %v298 = vunpack.c.l.b16 %v215
      %v299 = vunpack.c.l.b16 %v216
      %v300 = vunpack.c.l.b16 %v218
      %v301 = vunpack.c.l.b16 %v219
      %v302 = vunpack.c.l.b16 %v221
      %v303 = vunpack.c.l.b16 %v222
      %v304 = vunpack.c.l.b16 %v224
      %v305 = vunpack.c.l.b16 %v225
      %v306 = vunpack.c.l.b16 %v227
      %v307 = vunpack.c.l.b16 %v228
      %v308 = vunpack.c.l.b16 %v230
      %v309 = vunpack.c.l.b16 %v231
      %v310 = vunpack.c.l.b16 %v233
      %v311 = vunpack.c.l.b16 %v234
      %v312 = vunpack.c.l.b16 %v236
      %v313 = vunpack.c.l.b16 %v237
      %v314 = vunpack.c.l.b16 %v239
      %v315 = vunpack.c.l.b16 %v240
      %v316 = vunpack.c.l.b16 %v242
      %v317 = vunpack.c.l.b16 %v243
      %v318 = vunpack.c.l.b16 %v245
      %v319 = vunpack.c.l.b16 %v246
      %v320 = vunpack.c.l.b16 %v248
      %v321 = vunpack.c.l.b16 %v249
      %v322 = vunpack.c.l.b16 %v251
      %v323 = vunpack.c.l.b16 %v252
      %v324 = vpack.c.b16 %v293, %v292
      %v325 = vpack.c.b16 %v295, %v294
      %v326 = vpack.c.b16 %v297, %v296
      %v327 = vpack.c.b16 %v299, %v298
      %v328 = vpack.c.b16 %v301, %v300
      %v329 = vpack.c.b16 %v303, %v302
      %v330 = vpack.c.b16 %v305, %v304
      %v331 = vpack.c.b16 %v307, %v306
      %v332 = vpack.c.b16 %v309, %v308
      %v333 = vpack.c.b16 %v311, %v310
      %v334 = vpack.c.b16 %v313, %v312
      %v335 = vpack.c.b16 %v315, %v314
      %v336 = vpack.c.b16 %v317, %v316
      %v337 = vpack.c.b16 %v319, %v318
      %v338 = vpack.c.b16 %v321, %v320
      %v339 = vpack.c.b16 %v323, %v322
      %v356 = vunpack.c.l.b16 %v208
      %v357 = vunpack.c.l.b16 %v211
      %v358 = vunpack.c.l.b16 %v214
      %v359 = vunpack.c.l.b16 %v217
      %v360 = vunpack.c.l.b16 %v220
      %v361 = vunpack.c.l.b16 %v223
      %v362 = vunpack.c.l.b16 %v226
      %v363 = vunpack.c.l.b16 %v229
      %v364 = vunpack.c.l.b16 %v232
      %v365 = vunpack.c.l.b16 %v235
      %v366 = vunpack.c.l.b16 %v238
      %v367 = vunpack.c.l.b16 %v241
      %v368 = vunpack.c.l.b16 %v244
      %v369 = vunpack.c.l.b16 %v247
      %v370 = vunpack.c.l.b16 %v250
      %v371 = vunpack.c.l.b16 %v253
      %v372 = vpack.c.b16 %v356, %v356
      %v373 = vpack.c.b16 %v357, %v357
      %v374 = vpack.c.b16 %v358, %v358
      %v375 = vpack.c.b16 %v359, %v359
      %v376 = vpack.c.b16 %v360, %v360
      %v377 = vpack.c.b16 %v361, %v361
      %v378 = vpack.c.b16 %v362, %v362
      %v379 = vpack.c.b16 %v363, %v363
      %v380 = vpack.c.b16 %v364, %v364
      %v381 = vpack.c.b16 %v365, %v365
      %v382 = vpack.c.b16 %v366, %v366
      %v383 = vpack.c.b16 %v367, %v367
      %v384 = vpack.c.b16 %v368, %v368
      %v385 = vpack.c.b16 %v369, %v369
      %v386 = vpack.c.b16 %v370, %v370
      %v387 = vpack.c.b16 %v371, %v371
      %vm388 = vsmask.f32 7424
      %v390 = vshrl.u32 %v324, 16
      %v392 = vshll.u32 %v324, 16
      %v394 = vrot.slane %v392, 1
      %v395 = vor.u32 %v390, %v394
      %v397 = vshll.u32 %v372, 16
      %v399 = vrot.slane %v397, 1
      %v400 = vsel %vm388, %v395, %v399
      %v402 = vshrl.u32 %v325, 16
      %v404 = vshll.u32 %v325, 16
      %v406 = vrot.slane %v404, 1
      %v407 = vor.u32 %v402, %v406
      %v409 = vshll.u32 %v373, 16
      %v411 = vrot.slane %v409, 1
      %v412 = vsel %vm388, %v407, %v411
      %v414 = vshrl.u32 %v326, 16
      %v416 = vshll.u32 %v326, 16
      %v418 = vrot.slane %v416, 1
      %v419 = vor.u32 %v414, %v418
      %v421 = vshll.u32 %v374, 16
      %v423 = vrot.slane %v421, 1
      %v424 = vsel %vm388, %v419, %v423
      %v426 = vshrl.u32 %v327, 16
      %v428 = vshll.u32 %v327, 16
      %v430 = vrot.slane %v428, 1
      %v431 = vor.u32 %v426, %v430
      %v433 = vshll.u32 %v375, 16
      %v435 = vrot.slane %v433, 1
      %v436 = vsel %vm388, %v431, %v435
      %v438 = vshrl.u32 %v328, 16
      %v440 = vshll.u32 %v328, 16
      %v442 = vrot.slane %v440, 1
      %v443 = vor.u32 %v438, %v442
      %v445 = vshll.u32 %v376, 16
      %v447 = vrot.slane %v445, 1
      %v448 = vsel %vm388, %v443, %v447
      %v450 = vshrl.u32 %v329, 16
      %v452 = vshll.u32 %v329, 16
      %v454 = vrot.slane %v452, 1
      %v455 = vor.u32 %v450, %v454
      %v457 = vshll.u32 %v377, 16
      %v459 = vrot.slane %v457, 1
      %v460 = vsel %vm388, %v455, %v459
      %v462 = vshrl.u32 %v330, 16
      %v464 = vshll.u32 %v330, 16
      %v466 = vrot.slane %v464, 1
      %v467 = vor.u32 %v462, %v466
      %v469 = vshll.u32 %v378, 16
      %v471 = vrot.slane %v469, 1
      %v472 = vsel %vm388, %v467, %v471
      %v474 = vshrl.u32 %v331, 16
      %v476 = vshll.u32 %v331, 16
      %v478 = vrot.slane %v476, 1
      %v479 = vor.u32 %v474, %v478
      %v481 = vshll.u32 %v379, 16
      %v483 = vrot.slane %v481, 1
      %v484 = vsel %vm388, %v479, %v483
      %v486 = vshrl.u32 %v332, 16
      %v488 = vshll.u32 %v332, 16
      %v490 = vrot.slane %v488, 1
      %v491 = vor.u32 %v486, %v490
      %v493 = vshll.u32 %v380, 16
      %v495 = vrot.slane %v493, 1
      %v496 = vsel %vm388, %v491, %v495
      %v498 = vshrl.u32 %v333, 16
      %v500 = vshll.u32 %v333, 16
      %v502 = vrot.slane %v500, 1
      %v503 = vor.u32 %v498, %v502
      %v505 = vshll.u32 %v381, 16
      %v507 = vrot.slane %v505, 1
      %v508 = vsel %vm388, %v503, %v507
      %v510 = vshrl.u32 %v334, 16
      %v512 = vshll.u32 %v334, 16
      %v514 = vrot.slane %v512, 1
      %v515 = vor.u32 %v510, %v514
      %v517 = vshll.u32 %v382, 16
      %v519 = vrot.slane %v517, 1
      %v520 = vsel %vm388, %v515, %v519
      %v522 = vshrl.u32 %v335, 16
      %v524 = vshll.u32 %v335, 16
      %v526 = vrot.slane %v524, 1
      %v527 = vor.u32 %v522, %v526
      %v529 = vshll.u32 %v383, 16
      %v531 = vrot.slane %v529, 1
      %v532 = vsel %vm388, %v527, %v531
      %v534 = vshrl.u32 %v336, 16
      %v536 = vshll.u32 %v336, 16
      %v538 = vrot.slane %v536, 1
      %v539 = vor.u32 %v534, %v538
      %v541 = vshll.u32 %v384, 16
      %v543 = vrot.slane %v541, 1
      %v544 = vsel %vm388, %v539, %v543
      %v546 = vshrl.u32 %v337, 16
      %v548 = vshll.u32 %v337, 16
      %v550 = vrot.slane %v548, 1
      %v551 = vor.u32 %v546, %v550
      %v553 = vshll.u32 %v385, 16
      %v555 = vrot.slane %v553, 1
      %v556 = vsel %vm388, %v551, %v555
      %v558 = vshrl.u32 %v338, 16
      %v560 = vshll.u32 %v338, 16
      %v562 = vrot.slane %v560, 1
      %v563 = vor.u32 %v558, %v562
      %v565 = vshll.u32 %v386, 16
      %v567 = vrot.slane %v565, 1
      %v568 = vsel %vm388, %v563, %v567
      %v570 = vshrl.u32 %v339, 16
      %v572 = vshll.u32 %v339, 16
      %v574 = vrot.slane %v572, 1
      %v575 = vor.u32 %v570, %v574
      %v577 = vshll.u32 %v387, 16
      %v579 = vrot.slane %v577, 1
      %v580 = vsel %vm388, %v575, %v579
      %581 = vrot.lane.b32.xlu0 %v400, 5
      %v582 = vpop.permute.xlu0 %581
      %583 = vrot.lane.b32.xlu0 %v412, 5
      %v584 = vpop.permute.xlu0 %583
      %585 = vrot.lane.b32.xlu0 %v424, 5
      %v586 = vpop.permute.xlu0 %585
      %587 = vrot.lane.b32.xlu0 %v436, 5
      %v588 = vpop.permute.xlu0 %587
      %589 = vrot.lane.b32.xlu0 %v448, 5
      %v590 = vpop.permute.xlu0 %589
      %591 = vrot.lane.b32.xlu0 %v460, 5
      %v592 = vpop.permute.xlu0 %591
      %593 = vrot.lane.b32.xlu0 %v472, 5
      %v594 = vpop.permute.xlu0 %593
      %595 = vrot.lane.b32.xlu0 %v484, 5
      %v596 = vpop.permute.xlu0 %595
      %597 = vrot.lane.b32.xlu0 %v496, 5
      %v598 = vpop.permute.xlu0 %597
      %599 = vrot.lane.b32.xlu0 %v508, 5
      %v600 = vpop.permute.xlu0 %599
      %601 = vrot.lane.b32.xlu0 %v520, 5
      %v602 = vpop.permute.xlu0 %601
      %603 = vrot.lane.b32.xlu0 %v532, 5
      %v604 = vpop.permute.xlu0 %603
      %605 = vrot.lane.b32.xlu0 %v544, 5
      %v606 = vpop.permute.xlu0 %605
      %607 = vrot.lane.b32.xlu0 %v556, 5
      %v608 = vpop.permute.xlu0 %607
      %609 = vrot.lane.b32.xlu0 %v568, 5
      %v610 = vpop.permute.xlu0 %609
      %611 = vrot.lane.b32.xlu0 %v580, 5
      %v612 = vpop.permute.xlu0 %611
      %vm613 = vcmask 1046528
      %v614 = vrot.slane %v324, 1
      %v615 = vrot.slane %v372, 1
      %v616 = vsel %vm613, %v614, %v615
      %v617 = vrot.slane %v325, 1
      %v618 = vrot.slane %v373, 1
      %v619 = vsel %vm613, %v617, %v618
      %v620 = vrot.slane %v326, 1
      %v621 = vrot.slane %v374, 1
      %v622 = vsel %vm613, %v620, %v621
      %v623 = vrot.slane %v327, 1
      %v624 = vrot.slane %v375, 1
      %v625 = vsel %vm613, %v623, %v624
      %v626 = vrot.slane %v328, 1
      %v627 = vrot.slane %v376, 1
      %v628 = vsel %vm613, %v626, %v627
      %v629 = vrot.slane %v329, 1
      %v630 = vrot.slane %v377, 1
      %v631 = vsel %vm613, %v629, %v630
      %v632 = vrot.slane %v330, 1
      %v633 = vrot.slane %v378, 1
      %v634 = vsel %vm613, %v632, %v633
      %v635 = vrot.slane %v331, 1
      %v636 = vrot.slane %v379, 1
      %v637 = vsel %vm613, %v635, %v636
      %v638 = vrot.slane %v332, 1
      %v639 = vrot.slane %v380, 1
      %v640 = vsel %vm613, %v638, %v639
      %v641 = vrot.slane %v333, 1
      %v642 = vrot.slane %v381, 1
      %v643 = vsel %vm613, %v641, %v642
      %v644 = vrot.slane %v334, 1
      %v645 = vrot.slane %v382, 1
      %v646 = vsel %vm613, %v644, %v645
      %v647 = vrot.slane %v335, 1
      %v648 = vrot.slane %v383, 1
      %v649 = vsel %vm613, %v647, %v648
      %v650 = vrot.slane %v336, 1
      %v651 = vrot.slane %v384, 1
      %v652 = vsel %vm613, %v650, %v651
      %v653 = vrot.slane %v337, 1
      %v654 = vrot.slane %v385, 1
      %v655 = vsel %vm613, %v653, %v654
      %v656 = vrot.slane %v338, 1
      %v657 = vrot.slane %v386, 1
      %v658 = vsel %vm613, %v656, %v657
      %v659 = vrot.slane %v339, 1
      %v660 = vrot.slane %v387, 1
      %v661 = vsel %vm613, %v659, %v660
      %662 = vrot.lane.b32.xlu0 %v616, 10
      %v663 = vpop.permute.xlu0 %662
      %664 = vrot.lane.b32.xlu0 %v619, 10
      %v665 = vpop.permute.xlu0 %664
      %666 = vrot.lane.b32.xlu0 %v622, 10
      %v667 = vpop.permute.xlu0 %666
      %668 = vrot.lane.b32.xlu0 %v625, 10
      %v669 = vpop.permute.xlu0 %668
      %670 = vrot.lane.b32.xlu0 %v628, 10
      %v671 = vpop.permute.xlu0 %670
      %672 = vrot.lane.b32.xlu0 %v631, 10
      %v673 = vpop.permute.xlu0 %672
      %674 = vrot.lane.b32.xlu0 %v634, 10
      %v675 = vpop.permute.xlu0 %674
      %676 = vrot.lane.b32.xlu0 %v637, 10
      %v677 = vpop.permute.xlu0 %676
      %678 = vrot.lane.b32.xlu0 %v640, 10
      %v679 = vpop.permute.xlu0 %678
      %680 = vrot.lane.b32.xlu0 %v643, 10
      %v681 = vpop.permute.xlu0 %680
      %682 = vrot.lane.b32.xlu0 %v646, 10
      %v683 = vpop.permute.xlu0 %682
      %684 = vrot.lane.b32.xlu0 %v649, 10
      %v685 = vpop.permute.xlu0 %684
      %686 = vrot.lane.b32.xlu0 %v652, 10
      %v687 = vpop.permute.xlu0 %686
      %688 = vrot.lane.b32.xlu0 %v655, 10
      %v689 = vpop.permute.xlu0 %688
      %690 = vrot.lane.b32.xlu0 %v658, 10
      %v691 = vpop.permute.xlu0 %690
      %692 = vrot.lane.b32.xlu0 %v661, 10
      %v693 = vpop.permute.xlu0 %692
      %v696 = vunpack.c.l.b16 %v254
      %v697 = vunpack.c.l.b16 %v255
      %v698 = vpack.c.b16 %v697, %v696
      %699 = vrot.lane.b32.xlu0 %v325, 15
      %v700 = vpop.permute.xlu0 %699
      %701 = vrot.lane.b32.xlu0 %v326, 15
      %v702 = vpop.permute.xlu0 %701
      %703 = vrot.lane.b32.xlu0 %v327, 15
      %v704 = vpop.permute.xlu0 %703
      %705 = vrot.lane.b32.xlu0 %v328, 15
      %v706 = vpop.permute.xlu0 %705
      %707 = vrot.lane.b32.xlu0 %v329, 15
      %v708 = vpop.permute.xlu0 %707
      %709 = vrot.lane.b32.xlu0 %v330, 15
      %v710 = vpop.permute.xlu0 %709
      %711 = vrot.lane.b32.xlu0 %v331, 15
      %v712 = vpop.permute.xlu0 %711
      %713 = vrot.lane.b32.xlu0 %v332, 15
      %v714 = vpop.permute.xlu0 %713
      %715 = vrot.lane.b32.xlu0 %v333, 15
      %v716 = vpop.permute.xlu0 %715
      %717 = vrot.lane.b32.xlu0 %v334, 15
      %v718 = vpop.permute.xlu0 %717
      %719 = vrot.lane.b32.xlu0 %v335, 15
      %v720 = vpop.permute.xlu0 %719
      %721 = vrot.lane.b32.xlu0 %v336, 15
      %v722 = vpop.permute.xlu0 %721
      %723 = vrot.lane.b32.xlu0 %v337, 15
      %v724 = vpop.permute.xlu0 %723
      %725 = vrot.lane.b32.xlu0 %v338, 15
      %v726 = vpop.permute.xlu0 %725
      %727 = vrot.lane.b32.xlu0 %v339, 15
      %v728 = vpop.permute.xlu0 %727
      %729 = vrot.lane.b32.xlu0 %v698, 15
      %v730 = vpop.permute.xlu0 %729
      %v732 = vunpack.c.l.b16 %v256
      %v733 = vpack.c.b16 %v732, %v732
      %v735 = vshrl.u32 %v698, 16
      %v737 = vshll.u32 %v698, 16
      %v739 = vrot.slane %v737, 1
      %v740 = vor.u32 %v735, %v739
      %v742 = vshll.u32 %v733, 16
      %v744 = vrot.slane %v742, 1
      %v745 = vsel %vm388, %v740, %v744
      %746 = vrot.lane.b32.xlu0 %v412, 20
      %v747 = vpop.permute.xlu0 %746
      %748 = vrot.lane.b32.xlu0 %v424, 20
      %v749 = vpop.permute.xlu0 %748
      %750 = vrot.lane.b32.xlu0 %v436, 20
      %v751 = vpop.permute.xlu0 %750
      %752 = vrot.lane.b32.xlu0 %v448, 20
      %v753 = vpop.permute.xlu0 %752
      %754 = vrot.lane.b32.xlu0 %v460, 20
      %v755 = vpop.permute.xlu0 %754
      %756 = vrot.lane.b32.xlu0 %v472, 20
      %v757 = vpop.permute.xlu0 %756
      %758 = vrot.lane.b32.xlu0 %v484, 20
      %v759 = vpop.permute.xlu0 %758
      %760 = vrot.lane.b32.xlu0 %v496, 20
      %v761 = vpop.permute.xlu0 %760
      %762 = vrot.lane.b32.xlu0 %v508, 20
      %v763 = vpop.permute.xlu0 %762
      %764 = vrot.lane.b32.xlu0 %v520, 20
      %v765 = vpop.permute.xlu0 %764
      %766 = vrot.lane.b32.xlu0 %v532, 20
      %v767 = vpop.permute.xlu0 %766
      %768 = vrot.lane.b32.xlu0 %v544, 20
      %v769 = vpop.permute.xlu0 %768
      %770 = vrot.lane.b32.xlu0 %v556, 20
      %v771 = vpop.permute.xlu0 %770
      %772 = vrot.lane.b32.xlu0 %v568, 20
      %v773 = vpop.permute.xlu0 %772
      %774 = vrot.lane.b32.xlu0 %v580, 20
      %v775 = vpop.permute.xlu0 %774
      %776 = vrot.lane.b32.xlu0 %v745, 20
      %v777 = vpop.permute.xlu0 %776
      %v778 = vrot.slane %v698, 1
      %v779 = vrot.slane %v733, 1
      %v780 = vsel %vm613, %v778, %v779
      %781 = vrot.lane.b32.xlu0 %v619, 25
      %v782 = vpop.permute.xlu0 %781
      %783 = vrot.lane.b32.xlu0 %v622, 25
      %v784 = vpop.permute.xlu0 %783
      %785 = vrot.lane.b32.xlu0 %v625, 25
      %v786 = vpop.permute.xlu0 %785
      %787 = vrot.lane.b32.xlu0 %v628, 25
      %v788 = vpop.permute.xlu0 %787
      %789 = vrot.lane.b32.xlu0 %v631, 25
      %v790 = vpop.permute.xlu0 %789
      %791 = vrot.lane.b32.xlu0 %v634, 25
      %v792 = vpop.permute.xlu0 %791
      %793 = vrot.lane.b32.xlu0 %v637, 25
      %v794 = vpop.permute.xlu0 %793
      %795 = vrot.lane.b32.xlu0 %v640, 25
      %v796 = vpop.permute.xlu0 %795
      %797 = vrot.lane.b32.xlu0 %v643, 25
      %v798 = vpop.permute.xlu0 %797
      %799 = vrot.lane.b32.xlu0 %v646, 25
      %v800 = vpop.permute.xlu0 %799
      %801 = vrot.lane.b32.xlu0 %v649, 25
      %v802 = vpop.permute.xlu0 %801
      %803 = vrot.lane.b32.xlu0 %v652, 25
      %v804 = vpop.permute.xlu0 %803
      %805 = vrot.lane.b32.xlu0 %v655, 25
      %v806 = vpop.permute.xlu0 %805
      %807 = vrot.lane.b32.xlu0 %v658, 25
      %v808 = vpop.permute.xlu0 %807
      %809 = vrot.lane.b32.xlu0 %v661, 25
      %v810 = vpop.permute.xlu0 %809
      %811 = vrot.lane.b32.xlu0 %v780, 25
      %v812 = vpop.permute.xlu0 %811
      %v815 = vunpack.c.l.b16 %v257
      %v816 = vunpack.c.l.b16 %v258
      %v817 = vpack.c.b16 %v816, %v815
      %818 = vrot.lane.b32.xlu0 %v326, 30
      %v819 = vpop.permute.xlu0 %818
      %820 = vrot.lane.b32.xlu0 %v327, 30
      %v821 = vpop.permute.xlu0 %820
      %822 = vrot.lane.b32.xlu0 %v328, 30
      %v823 = vpop.permute.xlu0 %822
      %824 = vrot.lane.b32.xlu0 %v329, 30
      %v825 = vpop.permute.xlu0 %824
      %826 = vrot.lane.b32.xlu0 %v330, 30
      %v827 = vpop.permute.xlu0 %826
      %828 = vrot.lane.b32.xlu0 %v331, 30
      %v829 = vpop.permute.xlu0 %828
      %830 = vrot.lane.b32.xlu0 %v332, 30
      %v831 = vpop.permute.xlu0 %830
      %832 = vrot.lane.b32.xlu0 %v333, 30
      %v833 = vpop.permute.xlu0 %832
      %834 = vrot.lane.b32.xlu0 %v334, 30
      %v835 = vpop.permute.xlu0 %834
      %836 = vrot.lane.b32.xlu0 %v335, 30
      %v837 = vpop.permute.xlu0 %836
      %838 = vrot.lane.b32.xlu0 %v336, 30
      %v839 = vpop.permute.xlu0 %838
      %840 = vrot.lane.b32.xlu0 %v337, 30
      %v841 = vpop.permute.xlu0 %840
      %842 = vrot.lane.b32.xlu0 %v338, 30
      %v843 = vpop.permute.xlu0 %842
      %844 = vrot.lane.b32.xlu0 %v339, 30
      %v845 = vpop.permute.xlu0 %844
      %846 = vrot.lane.b32.xlu0 %v698, 30
      %v847 = vpop.permute.xlu0 %846
      %848 = vrot.lane.b32.xlu0 %v817, 30
      %v849 = vpop.permute.xlu0 %848
      %v851 = vunpack.c.l.b16 %v259
      %v852 = vpack.c.b16 %v851, %v851
      %v854 = vshrl.u32 %v817, 16
      %v856 = vshll.u32 %v817, 16
      %v858 = vrot.slane %v856, 1
      %v859 = vor.u32 %v854, %v858
      %v861 = vshll.u32 %v852, 16
      %v863 = vrot.slane %v861, 1
      %v864 = vsel %vm388, %v859, %v863
      %865 = vrot.lane.b32.xlu0 %v424, 35
      %v866 = vpop.permute.xlu0 %865
      %867 = vrot.lane.b32.xlu0 %v436, 35
      %v868 = vpop.permute.xlu0 %867
      %869 = vrot.lane.b32.xlu0 %v448, 35
      %v870 = vpop.permute.xlu0 %869
      %871 = vrot.lane.b32.xlu0 %v460, 35
      %v872 = vpop.permute.xlu0 %871
      %873 = vrot.lane.b32.xlu0 %v472, 35
      %v874 = vpop.permute.xlu0 %873
      %875 = vrot.lane.b32.xlu0 %v484, 35
      %v876 = vpop.permute.xlu0 %875
      %877 = vrot.lane.b32.xlu0 %v496, 35
      %v878 = vpop.permute.xlu0 %877
      %879 = vrot.lane.b32.xlu0 %v508, 35
      %v880 = vpop.permute.xlu0 %879
      %881 = vrot.lane.b32.xlu0 %v520, 35
      %v882 = vpop.permute.xlu0 %881
      %883 = vrot.lane.b32.xlu0 %v532, 35
      %v884 = vpop.permute.xlu0 %883
      %885 = vrot.lane.b32.xlu0 %v544, 35
      %v886 = vpop.permute.xlu0 %885
      %887 = vrot.lane.b32.xlu0 %v556, 35
      %v888 = vpop.permute.xlu0 %887
      %889 = vrot.lane.b32.xlu0 %v568, 35
      %v890 = vpop.permute.xlu0 %889
      %891 = vrot.lane.b32.xlu0 %v580, 35
      %v892 = vpop.permute.xlu0 %891
      %893 = vrot.lane.b32.xlu0 %v745, 35
      %v894 = vpop.permute.xlu0 %893
      %895 = vrot.lane.b32.xlu0 %v864, 35
      %v896 = vpop.permute.xlu0 %895
      %v897 = vrot.slane %v817, 1
      %v898 = vrot.slane %v852, 1
      %v899 = vsel %vm613, %v897, %v898
      %900 = vrot.lane.b32.xlu0 %v622, 40
      %v901 = vpop.permute.xlu0 %900
      %902 = vrot.lane.b32.xlu0 %v625, 40
      %v903 = vpop.permute.xlu0 %902
      %904 = vrot.lane.b32.xlu0 %v628, 40
      %v905 = vpop.permute.xlu0 %904
      %906 = vrot.lane.b32.xlu0 %v631, 40
      %v907 = vpop.permute.xlu0 %906
      %908 = vrot.lane.b32.xlu0 %v634, 40
      %v909 = vpop.permute.xlu0 %908
      %910 = vrot.lane.b32.xlu0 %v637, 40
      %v911 = vpop.permute.xlu0 %910
      %912 = vrot.lane.b32.xlu0 %v640, 40
      %v913 = vpop.permute.xlu0 %912
      %914 = vrot.lane.b32.xlu0 %v643, 40
      %v915 = vpop.permute.xlu0 %914
      %916 = vrot.lane.b32.xlu0 %v646, 40
      %v917 = vpop.permute.xlu0 %916
      %918 = vrot.lane.b32.xlu0 %v649, 40
      %v919 = vpop.permute.xlu0 %918
      %920 = vrot.lane.b32.xlu0 %v652, 40
      %v921 = vpop.permute.xlu0 %920
      %922 = vrot.lane.b32.xlu0 %v655, 40
      %v923 = vpop.permute.xlu0 %922
      %924 = vrot.lane.b32.xlu0 %v658, 40
      %v925 = vpop.permute.xlu0 %924
      %926 = vrot.lane.b32.xlu0 %v661, 40
      %v927 = vpop.permute.xlu0 %926
      %928 = vrot.lane.b32.xlu0 %v780, 40
      %v929 = vpop.permute.xlu0 %928
      %930 = vrot.lane.b32.xlu0 %v899, 40
      %v931 = vpop.permute.xlu0 %930
      %vm932 = vcmask 39936
      %v934 = vsel %vm932, %v324, %v582
      %v936 = vsel %vm932, %v325, %v584
      %v938 = vsel %vm932, %v326, %v586
      %v940 = vsel %vm932, %v327, %v588
      %v942 = vsel %vm932, %v328, %v590
      %v944 = vsel %vm932, %v329, %v592
      %v946 = vsel %vm932, %v330, %v594
      %v948 = vsel %vm932, %v331, %v596
      %v950 = vsel %vm932, %v332, %v598
      %v952 = vsel %vm932, %v333, %v600
      %v954 = vsel %vm932, %v334, %v602
      %v956 = vsel %vm932, %v335, %v604
      %v958 = vsel %vm932, %v336, %v606
      %v960 = vsel %vm932, %v337, %v608
      %v962 = vsel %vm932, %v338, %v610
      %v964 = vsel %vm932, %v339, %v612
      %vm965 = vcmask 80896
      %v967 = vsel %vm965, %v934, %v663
      %v969 = vsel %vm965, %v936, %v665
      %v971 = vsel %vm965, %v938, %v667
      %v973 = vsel %vm965, %v940, %v669
      %v975 = vsel %vm965, %v942, %v671
      %v977 = vsel %vm965, %v944, %v673
      %v979 = vsel %vm965, %v946, %v675
      %v981 = vsel %vm965, %v948, %v677
      %v983 = vsel %vm965, %v950, %v679
      %v985 = vsel %vm965, %v952, %v681
      %v987 = vsel %vm965, %v954, %v683
      %v989 = vsel %vm965, %v956, %v685
      %v991 = vsel %vm965, %v958, %v687
      %v993 = vsel %vm965, %v960, %v689
      %v995 = vsel %vm965, %v962, %v691
      %v997 = vsel %vm965, %v964, %v693
      %vm998 = vcmask 121856
      %v1000 = vsel %vm998, %v967, %v700
      %v1002 = vsel %vm998, %v969, %v702
      %v1004 = vsel %vm998, %v971, %v704
      %v1006 = vsel %vm998, %v973, %v706
      %v1008 = vsel %vm998, %v975, %v708
      %v1010 = vsel %vm998, %v977, %v710
      %v1012 = vsel %vm998, %v979, %v712
      %v1014 = vsel %vm998, %v981, %v714
      %v1016 = vsel %vm998, %v983, %v716
      %v1018 = vsel %vm998, %v985, %v718
      %v1020 = vsel %vm998, %v987, %v720
      %v1022 = vsel %vm998, %v989, %v722
      %v1024 = vsel %vm998, %v991, %v724
      %v1026 = vsel %vm998, %v993, %v726
      %v1028 = vsel %vm998, %v995, %v728
      %v1030 = vsel %vm998, %v997, %v730
      %vm1031 = vcmask 162816
      %v1033 = vsel %vm1031, %v1000, %v747
      %v1035 = vsel %vm1031, %v1002, %v749
      %v1037 = vsel %vm1031, %v1004, %v751
      %v1039 = vsel %vm1031, %v1006, %v753
      %v1041 = vsel %vm1031, %v1008, %v755
      %v1043 = vsel %vm1031, %v1010, %v757
      %v1045 = vsel %vm1031, %v1012, %v759
      %v1047 = vsel %vm1031, %v1014, %v761
      %v1049 = vsel %vm1031, %v1016, %v763
      %v1051 = vsel %vm1031, %v1018, %v765
      %v1053 = vsel %vm1031, %v1020, %v767
      %v1055 = vsel %vm1031, %v1022, %v769
      %v1057 = vsel %vm1031, %v1024, %v771
      %v1059 = vsel %vm1031, %v1026, %v773
      %v1061 = vsel %vm1031, %v1028, %v775
      %v1063 = vsel %vm1031, %v1030, %v777
      %vm1064 = vcmask 203776
      %v1066 = vsel %vm1064, %v1033, %v782
      %v1068 = vsel %vm1064, %v1035, %v784
      %v1070 = vsel %vm1064, %v1037, %v786
      %v1072 = vsel %vm1064, %v1039, %v788
      %v1074 = vsel %vm1064, %v1041, %v790
      %v1076 = vsel %vm1064, %v1043, %v792
      %v1078 = vsel %vm1064, %v1045, %v794
      %v1080 = vsel %vm1064, %v1047, %v796
      %v1082 = vsel %vm1064, %v1049, %v798
      %v1084 = vsel %vm1064, %v1051, %v800
      %v1086 = vsel %vm1064, %v1053, %v802
      %v1088 = vsel %vm1064, %v1055, %v804
      %v1090 = vsel %vm1064, %v1057, %v806
      %v1092 = vsel %vm1064, %v1059, %v808
      %v1094 = vsel %vm1064, %v1061, %v810
      %v1096 = vsel %vm1064, %v1063, %v812
      %vm1097 = vcmask 244736
      %v1099 = vsel %vm1097, %v1066, %v819
      %v1101 = vsel %vm1097, %v1068, %v821
      %v1103 = vsel %vm1097, %v1070, %v823
      %v1105 = vsel %vm1097, %v1072, %v825
      %v1107 = vsel %vm1097, %v1074, %v827
      %v1109 = vsel %vm1097, %v1076, %v829
      %v1111 = vsel %vm1097, %v1078, %v831
      %v1113 = vsel %vm1097, %v1080, %v833
      %v1115 = vsel %vm1097, %v1082, %v835
      %v1117 = vsel %vm1097, %v1084, %v837
      %v1119 = vsel %vm1097, %v1086, %v839
      %v1121 = vsel %vm1097, %v1088, %v841
      %v1123 = vsel %vm1097, %v1090, %v843
      %v1125 = vsel %vm1097, %v1092, %v845
      %v1127 = vsel %vm1097, %v1094, %v847
      %v1129 = vsel %vm1097, %v1096, %v849
      %vm1130 = vcmask 285696
      %v1132 = vsel %vm1130, %v1099, %v866
      %v1134 = vsel %vm1130, %v1101, %v868
      %v1136 = vsel %vm1130, %v1103, %v870
      %v1138 = vsel %vm1130, %v1105, %v872
      %v1140 = vsel %vm1130, %v1107, %v874
      %v1142 = vsel %vm1130, %v1109, %v876
      %v1144 = vsel %vm1130, %v1111, %v878
      %v1146 = vsel %vm1130, %v1113, %v880
      %v1148 = vsel %vm1130, %v1115, %v882
      %v1150 = vsel %vm1130, %v1117, %v884
      %v1152 = vsel %vm1130, %v1119, %v886
      %v1154 = vsel %vm1130, %v1121, %v888
      %v1156 = vsel %vm1130, %v1123, %v890
      %v1158 = vsel %vm1130, %v1125, %v892
      %v1160 = vsel %vm1130, %v1127, %v894
      %v1162 = vsel %vm1130, %v1129, %v896
      %vm1163 = vcmask 326656
      %v1165 = vsel %vm1163, %v1132, %v901
      %v1167 = vsel %vm1163, %v1134, %v903
      %v1169 = vsel %vm1163, %v1136, %v905
      %v1171 = vsel %vm1163, %v1138, %v907
      %v1173 = vsel %vm1163, %v1140, %v909
      %v1175 = vsel %vm1163, %v1142, %v911
      %v1177 = vsel %vm1163, %v1144, %v913
      %v1179 = vsel %vm1163, %v1146, %v915
      %v1181 = vsel %vm1163, %v1148, %v917
      %v1183 = vsel %vm1163, %v1150, %v919
      %v1185 = vsel %vm1163, %v1152, %v921
      %v1187 = vsel %vm1163, %v1154, %v923
      %v1189 = vsel %vm1163, %v1156, %v925
      %v1191 = vsel %vm1163, %v1158, %v927
      %v1193 = vsel %vm1163, %v1160, %v929
      %v1195 = vsel %vm1163, %v1162, %v931
      %v1196 = vld [vmem:[%s186] sm:$0xf]
      %v1197 = vld [vmem:[%s186 + $0x4] sm:$0xf]
      %v1198 = vld [vmem:[%s186 + $0x8] sm:$0xf]
      %v1199 = vld [vmem:[%s186 + $0xc] sm:$0xf]
      %v1200 = vld [vmem:[%s186 + $0x10] sm:$0xf]
      %v1201 = vld [vmem:[%s186 + $0x14] sm:$0x7]
      %v1208 = vunpack.c.l.b16 %v1196
      %v1209 = vunpack.c.l.b16 %v1197
      %v1210 = vunpack.c.l.b16 %v1198
      %v1211 = vunpack.c.l.b16 %v1199
      %v1212 = vunpack.c.l.b16 %v1200
      %v1213 = vunpack.c.l.b16 %v1201
      %v1214 = vpack.c.b16 %v1209, %v1208
      %v1215 = vpack.c.b16 %v1211, %v1210
      %v1216 = vpack.c.b16 %v1213, %v1212
      %vm1219 = vcmask 367616
      %v1220 = vsel %vm1219, %v1165, 0
      %v1222 = vsel %vm1219, %v1167, 0
      %v1224 = vsel %vm1219, %v1169, 0
      %v1226 = vsel %vm1219, %v1171, 0
      %v1228 = vsel %vm1219, %v1173, 0
      %v1230 = vsel %vm1219, %v1175, 0
      %v1232 = vsel %vm1219, %v1177, 0
      %v1234 = vsel %vm1219, %v1179, 0
      %v1236 = vsel %vm1219, %v1181, 0
      %v1238 = vsel %vm1219, %v1183, 0
      %v1240 = vsel %vm1219, %v1185, 0
      %v1242 = vsel %vm1219, %v1187, 0
      %v1244 = vsel %vm1219, %v1189, 0
      %v1246 = vsel %vm1219, %v1191, 0
      %v1248 = vsel %vm1219, %v1193, 0
      %v1250 = vsel %vm1219, %v1195, 0
      %vm1252 = vcmask 1045504
      %vm1253 = vcmask 1046528
      %v1254 = vsel %vm1252, 4294967295, 65535
      %v1255 = vsel %vm1253, %v1254, 0
      %v1257 = vand.u32 %v1216, %v1255
      %1259 = vmatprep.subr.bf16.mxu0 0
      %1260 = vmatpush1.bf16.msra.mxu0 %v1214
      %1261 = vmatprep.subr.bf16.mxu0 0
      %1262 = vmatpush1.bf16.msra.mxu0 %v1215
      %1263 = vmatprep.subr.bf16.mxu0 0
      %1264 = vmatpush1.bf16.msra.mxu0 %v1257
      %1265 = vmatprep.subr.bf16.mxu0 0
      %1266 = vmatpush1.bf16.msra.mxu0 0
      %1267 = vmatprep.subr.bf16.mxu0 0
      %1268 = vmatpush1.bf16.msra.mxu0 0
      %1269 = vmatprep.subr.bf16.mxu0 0
      %1270 = vmatpush1.bf16.msra.mxu0 0
      %1271 = vmatprep.subr.bf16.mxu0 0
      %1272 = vmatpush1.bf16.msra.mxu0 0
      %1273 = vmatprep.subr.bf16.mxu0 0
      %1274 = vmatpush1.bf16.msra.mxu0 0
      %1275 = vmatprep.subr.bf16.mxu0 0
      %1276 = vmatpush1.bf16.msra.mxu0 0
      %1277 = vmatprep.subr.bf16.mxu0 0
      %1278 = vmatpush1.bf16.msra.mxu0 0
      %1279 = vmatprep.subr.bf16.mxu0 0
      %1280 = vmatpush1.bf16.msra.mxu0 0
      %1281 = vmatprep.subr.bf16.mxu0 0
      %1282 = vmatpush1.bf16.msra.mxu0 0
      %1283 = vmatprep.subr.bf16.mxu0 0
      %1284 = vmatpush1.bf16.msra.mxu0 0
      %1285 = vmatprep.subr.bf16.mxu0 0
      %1286 = vmatpush1.bf16.msra.mxu0 0
      %1287 = vmatprep.subr.bf16.mxu0 0
      %1288 = vmatpush1.bf16.msra.mxu0 0
      %1289 = vmatprep.subr.bf16.mxu0 0
      %1290 = vmatpush1.bf16.msra.mxu0 0
      %1291 = vmatprep.mubr.bf16.mxu0 0
      %1292 = vmatmul.mubr.bf16.gmra.mrb[0].mxu0 %v1220
      %v1293 = vpop.f32.mrb[0].mxu0
      %v1294 = vadd.f32 0.0, %v1293
      %v1295 = vpop.f32.mrb[0].mxu0
      %v1296 = vpop.f32.mrb[0].mxu0
      %v1297 = vadd.f32 0.0, %v1296
      %v1298 = vpop.f32.mrb[0].mxu0
      %1299 = vmatprep.mubr.bf16.mxu0 0
      %1300 = vmatmul.mubr.bf16.gmra.mrb[0].mxu0 %v1222
      %v1301 = vpop.f32.mrb[0].mxu0
      %v1302 = vadd.f32 0.0, %v1301
      %v1303 = vpop.f32.mrb[0].mxu0
      %v1304 = vpop.f32.mrb[0].mxu0
      %v1305 = vadd.f32 0.0, %v1304
      %v1306 = vpop.f32.mrb[0].mxu0
      %1307 = vmatprep.mubr.bf16.mxu0 0
      %1308 = vmatmul.mubr.bf16.gmra.mrb[0].mxu0 %v1224
      %v1309 = vpop.f32.mrb[0].mxu0
      %v1310 = vadd.f32 0.0, %v1309
      %v1311 = vpop.f32.mrb[0].mxu0
      %v1312 = vpop.f32.mrb[0].mxu0
      %v1313 = vadd.f32 0.0, %v1312
      %v1314 = vpop.f32.mrb[0].mxu0
      %1315 = vmatprep.mubr.bf16.mxu0 0
      %1316 = vmatmul.mubr.bf16.gmra.mrb[0].mxu0 %v1226
      %v1317 = vpop.f32.mrb[0].mxu0
      %v1318 = vadd.f32 0.0, %v1317
      %v1319 = vpop.f32.mrb[0].mxu0
      %v1320 = vpop.f32.mrb[0].mxu0
      %v1321 = vadd.f32 0.0, %v1320
      %v1322 = vpop.f32.mrb[0].mxu0
      %1323 = vmatprep.mubr.bf16.mxu0 0
      %1324 = vmatmul.mubr.bf16.gmra.mrb[0].mxu0 %v1228
      %v1325 = vpop.f32.mrb[0].mxu0
      %v1326 = vadd.f32 0.0, %v1325
      %v1327 = vpop.f32.mrb[0].mxu0
      %v1328 = vpop.f32.mrb[0].mxu0
      %v1329 = vadd.f32 0.0, %v1328
      %v1330 = vpop.f32.mrb[0].mxu0
      %1331 = vmatprep.mubr.bf16.mxu0 0
      %1332 = vmatmul.mubr.bf16.gmra.mrb[0].mxu0 %v1230
      %v1333 = vpop.f32.mrb[0].mxu0
      %v1334 = vadd.f32 0.0, %v1333
      %v1335 = vpop.f32.mrb[0].mxu0
      %v1336 = vpop.f32.mrb[0].mxu0
      %v1337 = vadd.f32 0.0, %v1336
      %v1338 = vpop.f32.mrb[0].mxu0
      %1339 = vmatprep.mubr.bf16.mxu0 0
      %1340 = vmatmul.mubr.bf16.gmra.mrb[0].mxu0 %v1232
      %v1341 = vpop.f32.mrb[0].mxu0
      %v1342 = vadd.f32 0.0, %v1341
      %v1343 = vpop.f32.mrb[0].mxu0
      %v1344 = vpop.f32.mrb[0].mxu0
      %v1345 = vadd.f32 0.0, %v1344
      %v1346 = vpop.f32.mrb[0].mxu0
      %1347 = vmatprep.mubr.bf16.mxu0 0
      %1348 = vmatmul.mubr.bf16.gmra.mrb[0].mxu0 %v1234
      %v1349 = vpop.f32.mrb[0].mxu0
      %v1350 = vadd.f32 0.0, %v1349
      %v1351 = vpop.f32.mrb[0].mxu0
      %v1352 = vpop.f32.mrb[0].mxu0
      %v1353 = vadd.f32 0.0, %v1352
      %v1354 = vpop.f32.mrb[0].mxu0
      %1355 = vmatprep.mubr.bf16.mxu0 0
      %1356 = vmatmul.mubr.bf16.gmra.mrb[0].mxu0 %v1236
      %v1357 = vpop.f32.mrb[0].mxu0
      %v1358 = vadd.f32 0.0, %v1357
      %v1359 = vpop.f32.mrb[0].mxu0
      %v1360 = vpop.f32.mrb[0].mxu0
      %v1361 = vadd.f32 0.0, %v1360
      %v1362 = vpop.f32.mrb[0].mxu0
      %1363 = vmatprep.mubr.bf16.mxu0 0
      %1364 = vmatmul.mubr.bf16.gmra.mrb[0].mxu0 %v1238
      %v1365 = vpop.f32.mrb[0].mxu0
      %v1366 = vadd.f32 0.0, %v1365
      %v1367 = vpop.f32.mrb[0].mxu0
      %v1368 = vpop.f32.mrb[0].mxu0
      %v1369 = vadd.f32 0.0, %v1368
      %v1370 = vpop.f32.mrb[0].mxu0
      %1371 = vmatprep.mubr.bf16.mxu0 0
      %1372 = vmatmul.mubr.bf16.gmra.mrb[0].mxu0 %v1240
      %v1373 = vpop.f32.mrb[0].mxu0
      %v1374 = vadd.f32 0.0, %v1373
      %v1375 = vpop.f32.mrb[0].mxu0
      %v1376 = vpop.f32.mrb[0].mxu0
      %v1377 = vadd.f32 0.0, %v1376
      %v1378 = vpop.f32.mrb[0].mxu0
      %1379 = vmatprep.mubr.bf16.mxu0 0
      %1380 = vmatmul.mubr.bf16.gmra.mrb[0].mxu0 %v1242
      %v1381 = vpop.f32.mrb[0].mxu0
      %v1382 = vadd.f32 0.0, %v1381
      %v1383 = vpop.f32.mrb[0].mxu0
      %v1384 = vpop.f32.mrb[0].mxu0
      %v1385 = vadd.f32 0.0, %v1384
      %v1386 = vpop.f32.mrb[0].mxu0
      %1387 = vmatprep.mubr.bf16.mxu0 0
      %1388 = vmatmul.mubr.bf16.gmra.mrb[0].mxu0 %v1244
      %v1389 = vpop.f32.mrb[0].mxu0
      %v1390 = vadd.f32 0.0, %v1389
      %v1391 = vpop.f32.mrb[0].mxu0
      %v1392 = vpop.f32.mrb[0].mxu0
      %v1393 = vadd.f32 0.0, %v1392
      %v1394 = vpop.f32.mrb[0].mxu0
      %1395 = vmatprep.mubr.bf16.mxu0 0
      %1396 = vmatmul.mubr.bf16.gmra.mrb[0].mxu0 %v1246
      %v1397 = vpop.f32.mrb[0].mxu0
      %v1398 = vadd.f32 0.0, %v1397
      %v1399 = vpop.f32.mrb[0].mxu0
      %v1400 = vpop.f32.mrb[0].mxu0
      %v1401 = vadd.f32 0.0, %v1400
      %v1402 = vpop.f32.mrb[0].mxu0
      %1403 = vmatprep.mubr.bf16.mxu0 0
      %1404 = vmatmul.mubr.bf16.gmra.mrb[0].mxu0 %v1248
      %v1405 = vpop.f32.mrb[0].mxu0
      %v1406 = vadd.f32 0.0, %v1405
      %v1407 = vpop.f32.mrb[0].mxu0
      %v1408 = vpop.f32.mrb[0].mxu0
      %v1409 = vadd.f32 0.0, %v1408
      %v1410 = vpop.f32.mrb[0].mxu0
      %1411 = vmatprep.mubr.bf16.mxu0 0
      %1412 = vmatmul.mubr.bf16.gmra.mrb[0].mxu0 %v1250
      %v1413 = vpop.f32.mrb[0].mxu0
      %v1414 = vadd.f32 0.0, %v1413
      %v1415 = vpop.f32.mrb[0].mxu0
      %v1416 = vpop.f32.mrb[0].mxu0
      %v1417 = vadd.f32 0.0, %v1416
      %v1418 = vpop.f32.mrb[0].mxu0
      %1419 = vdwg.mxu0
      %1420 = vst [vmem:[%s199] sm:$0xff] %v1294
      %1421 = vst [vmem:[%s199 + $0x8] sm:$0xff] %v1297
      %1422 = vst [vmem:[%s199 + $0x10] sm:$0xff] %v1302
      %1423 = vst [vmem:[%s199 + $0x18] sm:$0xff] %v1305
      %1424 = vst [vmem:[%s199 + $0x20] sm:$0xff] %v1310
      %1425 = vst [vmem:[%s199 + $0x28] sm:$0xff] %v1313
      %1426 = vst [vmem:[%s199 + $0x30] sm:$0xff] %v1318
      %1427 = vst [vmem:[%s199 + $0x38] sm:$0xff] %v1321
      %1428 = vst [vmem:[%s199 + $0x40] sm:$0xff] %v1326
      %1429 = vst [vmem:[%s199 + $0x48] sm:$0xff] %v1329
      %1430 = vst [vmem:[%s199 + $0x50] sm:$0xff] %v1334
      %1431 = vst [vmem:[%s199 + $0x58] sm:$0xff] %v1337
      %1432 = vst [vmem:[%s199 + $0x60] sm:$0xff] %v1342
      %1433 = vst [vmem:[%s199 + $0x68] sm:$0xff] %v1345
      %1434 = vst [vmem:[%s199 + $0x70] sm:$0xff] %v1350
      %1435 = vst [vmem:[%s199 + $0x78] sm:$0xff] %v1353
      %1436 = vst [vmem:[%s199 + $0x80] sm:$0xff] %v1358
      %1437 = vst [vmem:[%s199 + $0x88] sm:$0xff] %v1361
      %1438 = vst [vmem:[%s199 + $0x90] sm:$0xff] %v1366
      %1439 = vst [vmem:[%s199 + $0x98] sm:$0xff] %v1369
      %1440 = vst [vmem:[%s199 + $0xa0] sm:$0xff] %v1374
      %1441 = vst [vmem:[%s199 + $0xa8] sm:$0xff] %v1377
      %1442 = vst [vmem:[%s199 + $0xb0] sm:$0xff] %v1382
      %1443 = vst [vmem:[%s199 + $0xb8] sm:$0xff] %v1385
      %1444 = vst [vmem:[%s199 + $0xc0] sm:$0xff] %v1390
      %1445 = vst [vmem:[%s199 + $0xc8] sm:$0xff] %v1393
      %1446 = vst [vmem:[%s199 + $0xd0] sm:$0xff] %v1398
      %1447 = vst [vmem:[%s199 + $0xd8] sm:$0xff] %v1401
      %1448 = vst [vmem:[%s199 + $0xe0] sm:$0xff] %v1406
      %1449 = vst [vmem:[%s199 + $0xe8] sm:$0xff] %v1409
      %1450 = vst [vmem:[%s199 + $0xf0] sm:$0xff] %v1414
      %1451 = vst [vmem:[%s199 + $0xf8] sm:$0xff] %v1417
      %s1452 = smul.u32 16, %s19
      %p1453 = scmp.lt.s32.totalorder %s18, 1
      %s1454 = scalar_select %p1453, %s18, 1
      %p1455 = scmp.lt.s32.totalorder %s1452, 15
      %s1456 = scalar_select %p1455, %s1452, 15
      %p1457 = scmp.lt.s32.totalorder %s20, 0
      %s1458 = scalar_select %p1457, %s20, 0
      %s1459 = smul.addr %s1456, 2
      %s1460 = sadd.s32 %s1458, %s1459
      %s1461 = smul.addr %s1454, 32
      %s1462 = sadd.s32 %s1460, %s1461
      %s1463 = smul.addr %s1462, 8
      %s1464 = scalar_lea.vmem %s2, %s1463
      // Predicated region
      $region29: #{_mp_conv2d_forward.1} parent=27 // pred_check
        %p1465 = pneg %p106
      $region30: #{_mp_conv2d_forward.1} parent=27 // pred_check_branch
        %1467 = sbr.rel (%p1465) target = $region32
      $region31: #{_mp_conv2d_forward.1} parent=27 // pred_region
        %s1468 = smul.u32 16, %s19
      $region32: #{_mp_conv2d_forward.1} parent=27 // pred_fallthru
        _
    $region28: #{_mp_conv2d_forward.1} parent=5 // pred_fallthru
      _
    %p1469 = scmp.le.s32.totalorder 2, %s8
    // Predicated region
    $region33: #{_mp_conv2d_forward.1} parent=5 // pred_check
      %p1470 = pneg %p1469
    $region34: #{_mp_conv2d_forward.1} parent=5 // pred_check_branch
      %1472 = sbr.rel (%p1470) target = $region36
    $region35: #{_mp_conv2d_forward.1} parent=5 // pred_region
      %s1473 = ssub.s32 %s8, 2
      // Predicated region
      $region37: #{_mp_conv2d_forward.1} parent=35 // pred_check
        %p1474 = pneg %p112
      $region38: #{_mp_conv2d_forward.1} parent=35 // pred_check_branch
        %1476 = sbr.rel (%p1474) target = $region40
      $region39: #{_mp_conv2d_forward.1} parent=35 // pred_region
        %s1477 = smul.u32 16, %s22
        %p1478 = scmp.lt.s32.totalorder %s21, 1
        %s1479 = scalar_select %p1478, %s21, 1
        %p1480 = scmp.lt.s32.totalorder %s1477, 15
        %s1481 = scalar_select %p1480, %s1477, 15
        %p1482 = scmp.lt.s32.totalorder %s23, 0
        %s1483 = scalar_select %p1482, %s23, 0
        %s1484 = smul.addr %s1481, 2
        %s1485 = sadd.s32 %s1483, %s1484
        %s1486 = smul.addr %s1479, 32
        %s1487 = sadd.s32 %s1485, %s1486
        %s1488 = smul.addr %s1487, 8
        %s1489 = scalar_lea.vmem %s2, %s1488
      $region40: #{_mp_conv2d_forward.1} parent=35 // pred_fallthru
        _
    $region36: #{_mp_conv2d_forward.1} parent=5 // pred_fallthru
      _
  $region6: #{_mp_conv2d_forward.1} parent=0 // loop_footer
    %s12 = sadd.s32 1, %s8
  $region7: #{_mp_conv2d_forward.1} parent=0 // loop_footer_branch
    %7 = sbr.rel target = $region3
  $region8: #{_mp_conv2d_forward.1} parent=0 // loop_exit
    _

</llo_original>
